<compile_context>
chip_gen: v6e
topology: v6e:2x2x1
jax: 0.10.0
libtpu: 0.0.40
codegen_flags: <defaults>
</compile_context>

<pallas_src>
import functools

import jax
import jax.numpy as jnp
from jax.experimental import pallas as pl
from jax.experimental.pallas import tpu as pltpu

_LANES = 128
# 1024 x 128 f32 = 512 KiB per input block; 2 inputs x 2 pipeline buffers
# = 2 MiB of VMEM -> comfortably within the scoped limit on v5e/v6e/v7x
# while still amortizing the ~0.35 us per-grid-step overhead.
_MAX_TILE_ROWS = 1024


def _contrastive_loss_kernel(d_ref, y_ref, o_ref, *, margin, scale):
    i = pl.program_id(0)

    @pl.when(i == 0)
    def _():
        o_ref[...] = jnp.zeros_like(o_ref)

    # Elementwise hot path in f32 (inputs may arrive narrower, e.g. bf16).
    d = d_ref[...].astype(jnp.float32)
    y = y_ref[...].astype(jnp.float32)
    loss = (1.0 - y) * jnp.maximum(margin - d, 0.0) + y * d

    # Partial-sum into the VMEM-resident (1, 1) output accumulator.
    o_ref[...] += jnp.sum(loss, keepdims=True)

    @pl.when(i == pl.num_programs(0) - 1)
    def _():
        o_ref[...] = o_ref[...] * scale   # single fused constant: 0.5 / B


def contrastive_loss(distance, y, margin=0.5, max_tile_rows=_MAX_TILE_ROWS):
    """distance: (B,) float, y: (B,) 0/1 labels. Returns (1,) float32."""
    assert distance.ndim == 1 and distance.shape == y.shape
    batch = distance.shape[0]

    d = distance.astype(jnp.float32)
    yv = y.astype(jnp.float32)

    # --- pack into a lane-dense (rows, 128) layout --------------------------
    rows = pl.cdiv(batch, _LANES)
    if rows <= max_tile_rows:
        tile_rows = max(8, ((rows + 7) // 8) * 8)   # single (8,128)-aligned tile
    else:
        tile_rows = max_tile_rows
    rows_padded = ((rows + tile_rows - 1) // tile_rows) * tile_rows
    total = rows_padded * _LANES
    pad = total - batch

    # Zero-loss padding: d = 0, y = 1  =>  (1-1)*hinge + 1*0 == 0.
    d_p = jnp.pad(d, (0, pad), constant_values=0.0).reshape(rows_padded, _LANES)
    y_p = jnp.pad(yv, (0, pad), constant_values=1.0).reshape(rows_padded, _LANES)

    grid = (rows_padded // tile_rows,)
    kernel = functools.partial(
        _contrastive_loss_kernel,
        margin=float(margin),
        scale=0.5 / float(batch),   # fold "/ 2.0 / B" into one constant
    )

    out = pl.pallas_call(
        kernel,
        out_shape=jax.ShapeDtypeStruct((1, 1), jnp.float32),
        grid=grid,
        in_specs=[
            pl.BlockSpec((tile_rows, _LANES), lambda i: (i, 0)),
            pl.BlockSpec((tile_rows, _LANES), lambda i: (i, 0)),
        ],
        out_specs=pl.BlockSpec((1, 1), lambda i: (0, 0)),
        compiler_params=pltpu.CompilerParams(
            dimension_semantics=("arbitrary",),   # reduction axis
        ),
    )(d_p, y_p)

    # TODO(synk): on v7x (2 TensorCores) a leading "parallel" grid axis with two
    # partial sums combined in the wrapper would double HBM bandwidth for very
    # large B; for typical loss batch sizes this kernel should simply be fused
    # into the producer of `distance`.
    return out.reshape(1)


def _reference(distance, y, margin=0.5):
    loss = (1.0 - y) * jnp.maximum(margin - distance, 0.0) + y * distance
    return (jnp.sum(loss) / 2.0 / distance.shape[0]).reshape(1)


if __name__ == "__main__":
    key = jax.random.PRNGKey(0)
    k1, k2 = jax.random.split(key)

    # Deliberately NOT a multiple of 128 to exercise the zero-loss padding.
    B = 200
    distance = jax.random.uniform(k1, (B,), dtype=jnp.float32, minval=0.0, maxval=2.0)
    y = jax.random.bernoulli(k2, 0.5, (B,)).astype(jnp.float32)

    out = contrastive_loss(distance, y, margin=0.5)
    jax.block_until_ready(out)
    ref = _reference(distance, y, margin=0.5)
    assert out.shape == (1,)
    assert jnp.allclose(out, ref, rtol=1e-5, atol=1e-6), (out, ref)

    # Second check: force a multi-step grid (small max_tile_rows) to exercise
    # the accumulate / final-scale path of the tiled reduction.
    B2 = 2248
    k3, k4 = jax.random.split(k2)
    d2 = jax.random.uniform(k3, (B2,), dtype=jnp.float32, minval=0.0, maxval=2.0)
    y2 = jax.random.bernoulli(k4, 0.5, (B2,)).astype(jnp.float32)
    out2 = contrastive_loss(d2, y2, margin=0.5, max_tile_rows=8)
    jax.block_until_ready(out2)
    ref2 = _reference(d2, y2, margin=0.5)
    assert jnp.allclose(out2, ref2, rtol=1e-5, atol=1e-5), (out2, ref2)

    print("KERNEL_OK")
</pallas_src>

<mosaic_0001>
module attributes {stable_mosaic.version = 11 : i64} {
  func.func @_contrastive_loss_kernel(%arg0: i32, %arg1: memref<8x128xf32, #tpu.memory_space<vmem>>, %arg2: memref<8x128xf32, #tpu.memory_space<vmem>>, %arg3: memref<1x1xf32, #tpu.memory_space<vmem>>) attributes {dimension_semantics = [#tpu.dimension_semantics<arbitrary>], iteration_bounds = array<i64: 1>, scalar_prefetch = 0 : i64, scratch_operands = 0 : i64, tpu.core_type = #tpu.core_type<tc>, window_params = [{transform_indices = @transform_0, window_bounds = array<i64: 8, 128>}, {transform_indices = @transform_1, window_bounds = array<i64: 8, 128>}, {pipeline_mode = #tpu.pipeline_mode<synchronous>, transform_indices = @transform_2, window_bounds = array<i64: 1, 1>}]} {
    %c0_i32 = arith.constant 0 : i32
    %0 = arith.cmpi eq, %arg0, %c0_i32 : i32
    %1 = arith.extui %0 : i1 to i32
    %c0_i32_0 = arith.constant 0 : i32
    %2 = arith.cmpi ne, %1, %c0_i32_0 : i32
    scf.if %2 {
      %cst_13 = arith.constant 0.000000e+00 : f32
      %25 = vector.broadcast %cst_13 : f32 to vector<1x1xf32>
      %c0_14 = arith.constant 0 : index
      %c0_15 = arith.constant 0 : index
      %26 = vector.load %arg3[%c0_14, %c0_15] : memref<1x1xf32, #tpu.memory_space<vmem>>, vector<1x1xf32>
      tpu.vector_store %arg3[%c0_14, %c0_15], %25 {strides = array<i32>} : memref<1x1xf32, #tpu.memory_space<vmem>>, vector<1x1xf32>,
    } else {
    }
    %c0 = arith.constant 0 : index
    %c0_1 = arith.constant 0 : index
    %3 = vector.load %arg1[%c0, %c0_1] : memref<8x128xf32, #tpu.memory_space<vmem>>, vector<8x128xf32>
    %c0_2 = arith.constant 0 : index
    %c0_3 = arith.constant 0 : index
    %4 = vector.load %arg2[%c0_2, %c0_3] : memref<8x128xf32, #tpu.memory_space<vmem>>, vector<8x128xf32>
    %cst = arith.constant 1.000000e+00 : f32
    %5 = vector.broadcast %cst : f32 to vector<8x128xf32>
    %6 = arith.subf %5, %4 : vector<8x128xf32>
    %cst_4 = arith.constant 5.000000e-01 : f32
    %7 = vector.broadcast %cst_4 : f32 to vector<8x128xf32>
    %8 = arith.subf %7, %3 : vector<8x128xf32>
    %cst_5 = arith.constant 0.000000e+00 : f32
    %9 = vector.broadcast %cst_5 : f32 to vector<8x128xf32>
    %10 = arith.maximumf %8, %9 : vector<8x128xf32>
    %11 = arith.mulf %6, %10 : vector<8x128xf32>
    %12 = arith.mulf %4, %3 : vector<8x128xf32>
    %13 = arith.addf %11, %12 : vector<8x128xf32>
    %c0_6 = arith.constant 0 : index
    %c0_7 = arith.constant 0 : index
    %14 = vector.load %arg3[%c0_6, %c0_7] : memref<1x1xf32, #tpu.memory_space<vmem>>, vector<1x1xf32>
    %15 = vector.shape_cast %13 : vector<8x128xf32> to vector<1x8x128xf32>
    %cst_8 = arith.constant dense<0.000000e+00> : vector<1xf32>
    %16 = vector.multi_reduction <add>, %15, %cst_8 [1, 2] : vector<1x8x128xf32> to vector<1xf32>
    %17 = vector.shape_cast %16 : vector<1xf32> to vector<1x1x1xf32>
    %18 = vector.extract %17[0, 0, 0] : f32 from vector<1x1x1xf32>
    %19 = vector.broadcast %18 : f32 to vector<1x1xf32>
    %20 = arith.addf %14, %19 : vector<1x1xf32>
    %c0_9 = arith.constant 0 : index
    %c0_10 = arith.constant 0 : index
    %21 = vector.load %arg3[%c0_9, %c0_10] : memref<1x1xf32, #tpu.memory_space<vmem>>, vector<1x1xf32>
    tpu.vector_store %arg3[%c0_9, %c0_10], %20 {strides = array<i32>} : memref<1x1xf32, #tpu.memory_space<vmem>>, vector<1x1xf32>,
    %c0_i32_11 = arith.constant 0 : i32
    %22 = arith.cmpi eq, %arg0, %c0_i32_11 : i32
    %23 = arith.extui %22 : i1 to i32
    %c0_i32_12 = arith.constant 0 : i32
    %24 = arith.cmpi ne, %23, %c0_i32_12 : i32
    scf.if %24 {
      %c0_13 = arith.constant 0 : index
      %c0_14 = arith.constant 0 : index
      %25 = vector.load %arg3[%c0_13, %c0_14] : memref<1x1xf32, #tpu.memory_space<vmem>>, vector<1x1xf32>
      %cst_15 = arith.constant 2.500000e-03 : f32
      %26 = vector.broadcast %cst_15 : f32 to vector<1x1xf32>
      %27 = arith.mulf %25, %26 : vector<1x1xf32>
      %c0_16 = arith.constant 0 : index
      %c0_17 = arith.constant 0 : index
      %28 = vector.load %arg3[%c0_16, %c0_17] : memref<1x1xf32, #tpu.memory_space<vmem>>, vector<1x1xf32>
      tpu.vector_store %arg3[%c0_16, %c0_17], %27 {strides = array<i32>} : memref<1x1xf32, #tpu.memory_space<vmem>>, vector<1x1xf32>,
    } else {
    }
    return
  }
  func.func @transform_0(%arg0: i32) -> (i32, i32) {
    %c0_i32 = arith.constant 0 : i32
    %c0_i32_0 = arith.constant 0 : i32
    return %arg0, %c0_i32 : i32, i32
  }
  func.func @transform_1(%arg0: i32) -> (i32, i32) {
    %c0_i32 = arith.constant 0 : i32
    %c0_i32_0 = arith.constant 0 : i32
    return %arg0, %c0_i32 : i32, i32
  }
  func.func @transform_2(%arg0: i32) -> (i32, i32) {
    %c0_i32 = arith.constant 0 : i32
    %c0_i32_0 = arith.constant 0 : i32
    %c0_i32_1 = arith.constant 0 : i32
    return %c0_i32, %c0_i32_0 : i32, i32
  }
}

</mosaic_0001>

<llo_original>
// kernel: tpu_custom_call.1
$region0: #{tpu_custom_call.1}
  #allocation0 [shape = 'u32[]', space=smem, size = 0x4, offset = 0x4, fixed_abs, tag = 'smem constant byte address 0x4 - core index']
  #allocation1 [shape = 'u32[144,128]{1,0:T(1,128)}', space=vmem, size = 0x12000, scoped, tag = 'internal scratch']
  %s0 = inlined_call_operand.hbm [shape: f32[8,128], index: 0, kind: input, shape index: {}]
  %s1 = inlined_call_operand.hbm [shape: f32[8,128], index: 1, kind: input, shape index: {}]
  %s2 = inlined_call_operand.hbm [shape: f32[1,1], index: 2, kind: output, shape index: {}]
  %s3 = sld [smem:[#allocation0]]
  $region34: #{tpu_custom_call.1} parent=0
    _
  %s5 = ssub.s32 1, %s3
  %s6 = scalar_select 0, %s5, %s3
  $region1: #{tpu_custom_call.1} parent=0
    #allocation2 [shape = 'u8[4096]{0}', space=vmem, size = 0x1000, scoped, tag = 'input window, operand 0, single buffered']
    #allocation3 [shape = 's32[1]{0}', space=sflag, size = 0x4, scoped, tag = 'scoped memory for tpu_custom_call.1']
    #allocation4 [shape = 's32[1]{0}', space=sflag, size = 0x4, scoped, tag = 'scoped memory for tpu_custom_call.1']
    #allocation5 [shape = 'u8[4096]{0}', space=vmem, size = 0x1000, scoped, tag = 'input window, operand 1, single buffered']
    #allocation6 [shape = 's32[1]{0}', space=sflag, size = 0x4, scoped, tag = 'scoped memory for tpu_custom_call.1']
    #allocation7 [shape = 'u8[512]{0}', space=vmem, size = 0x400, scoped, tag = 'output window, operand 0, single buffered']
    %7 = vsyncpa [#allocation3], 0
    %8 = vsyncpa [#allocation6], 0
    %9 = vsyncpa [#allocation4], 0
    // Predicated region
    $region2: #{tpu_custom_call.1} parent=1 // pred_check
      _
    $region3: #{tpu_custom_call.1} parent=1 // pred_check_branch
      %11 = sbr.rel (0) target = $region5
    $region4: #{tpu_custom_call.1} parent=1 // pred_region
      %s13 = ssub.s32 128, 128
      %14 = vsyncadd [#allocation3], %s13
      %s16 = sshll.u32 [#allocation2], 4
      %s17 = int_to_ptr.vmem [resolvable:$true] %s16
      %19 = dma.hbm_to_vmem [thread:$0]  %s0, 128, %s17, [#allocation3]
    $region5: #{tpu_custom_call.1} parent=1 // pred_fallthru
      _
    // Predicated region
    $region6: #{tpu_custom_call.1} parent=1 // pred_check
      _
    $region7: #{tpu_custom_call.1} parent=1 // pred_check_branch
      %21 = sbr.rel (0) target = $region9
    $region8: #{tpu_custom_call.1} parent=1 // pred_region
      %s23 = ssub.s32 128, 128
      %24 = vsyncadd [#allocation6], %s23
      %s26 = sshll.u32 [#allocation5], 4
      %s27 = int_to_ptr.vmem [resolvable:$true] %s26
      %29 = dma.hbm_to_vmem [thread:$0]  %s1, 128, %s27, [#allocation6]
    $region9: #{tpu_custom_call.1} parent=1 // pred_fallthru
      _
    // Predicated region
    $region10: #{tpu_custom_call.1} parent=1 // pred_check
      _
    $region11: #{tpu_custom_call.1} parent=1 // pred_check_branch
      %31 = sbr.rel (0) target = $region13
    $region12: #{tpu_custom_call.1} parent=1 // pred_region
      %32 = dma.done [#allocation3], 128
    $region13: #{tpu_custom_call.1} parent=1 // pred_fallthru
      _
    // Predicated region
    $region14: #{tpu_custom_call.1} parent=1 // pred_check
      _
    $region15: #{tpu_custom_call.1} parent=1 // pred_check_branch
      %34 = sbr.rel (0) target = $region17
    $region16: #{tpu_custom_call.1} parent=1 // pred_region
      %35 = dma.done [#allocation6], 128
    $region17: #{tpu_custom_call.1} parent=1 // pred_fallthru
      _
    %p36 = scmp.eq.s32.totalorder 0, 0
    // Predicated region
    $region18: #{tpu_custom_call.1} parent=1 // pred_check
      %p37 = pneg %p36
    $region19: #{tpu_custom_call.1} parent=1 // pred_check_branch
      %39 = sbr.rel (%p37) target = $region21
    $region20: #{tpu_custom_call.1} parent=1 // pred_region
      %vm40 = vcmask 0
      %41 = vst.msk [vmem:[#allocation7] sm:$0x1] %vm40, 0.0
    $region21: #{tpu_custom_call.1} parent=1 // pred_fallthru
      _
    %v42 = vld [vmem:[#allocation2] sm:$0xff]
    %v43 = vld [vmem:[#allocation5] sm:$0xff]
    %v44 = vsub.f32 1.0, %v43
    %v45 = vsub.f32 0.5, %v42
    %v46 = vmax.f32 %v45, 0.0
    %v47 = vmul.f32 %v44, %v46
    %v48 = vmul.f32 %v43, %v42
    %v49 = vadd.f32 %v47, %v48
    %v50 = vld [vmem:[#allocation7] sm:$0x1]
    %51 = vadd.xlane.f32.xlu0 %v49
    %v52 = vpop.xlane.xlu0 %51
    %v53 = vrot.slane %v52, 4
    %v54 = vadd.f32 %v52, %v53
    %v55 = vrot.slane %v54, 2
    %v56 = vadd.f32 %v54, %v55
    %v57 = vrot.slane %v56, 1
    %v58 = vadd.f32 %v56, %v57
    %s59 = vtos %v58
    %v60 = vstv %s59
    %v61 = vadd.f32 %v50, %v60
    %vm62 = vcmask 0
    %63 = vst.msk [vmem:[#allocation7] sm:$0x1] %vm62, %v61
    // Predicated region
    $region22: #{tpu_custom_call.1} parent=1 // pred_check
      %p64 = pneg %p36
    $region23: #{tpu_custom_call.1} parent=1 // pred_check_branch
      %66 = sbr.rel (%p64) target = $region25
    $region24: #{tpu_custom_call.1} parent=1 // pred_region
      %v67 = vld [vmem:[#allocation7] sm:$0x1]
      %v68 = vmul.f32 %v67, 0.0025
      %69 = vst.msk [vmem:[#allocation7] sm:$0x1] %vm62, %v68
    $region25: #{tpu_custom_call.1} parent=1 // pred_fallthru
      _
    // Predicated region
    $region26: #{tpu_custom_call.1} parent=1 // pred_check
      _
    $region27: #{tpu_custom_call.1} parent=1 // pred_check_branch
      %71 = sbr.rel (0) target = $region29
    $region28: #{tpu_custom_call.1} parent=1 // pred_region
      %s73 = ssub.s32 16, 16
      %74 = vsyncadd [#allocation4], %s73
      %s76 = sshll.u32 [#allocation7], 4
      %s77 = int_to_ptr.vmem [resolvable:$true] %s76
      %79 = dma.vmem_to_hbm [thread:$0]  %s77, 16, %s2, [#allocation4]
    $region29: #{tpu_custom_call.1} parent=1 // pred_fallthru
      _
    // Predicated region
    $region30: #{tpu_custom_call.1} parent=1 // pred_check
      _
    $region31: #{tpu_custom_call.1} parent=1 // pred_check_branch
      %81 = sbr.rel (0) target = $region33
    $region32: #{tpu_custom_call.1} parent=1 // pred_region
      %82 = dma.done [#allocation4], 16
    $region33: #{tpu_custom_call.1} parent=1 // pred_fallthru
      _
    %83 = vsyncpa [#allocation3], 1
    %84 = vsyncpa [#allocation6], 1
    %85 = vsyncpa [#allocation4], 1

</llo_original>
